<compile_context>
chip_gen: v7x
topology: tpu7x:2x2x1
jax: 0.10.0
libtpu: 0.0.40
codegen_flags: <defaults>
</compile_context>

<pallas_src>
import functools

import jax
import jax.numpy as jnp
from jax.experimental import pallas as pl
from jax.experimental.pallas import tpu as pltpu


def _round_up(n, m):
    return ((n + m - 1) // m) * m


def _folded_matmul_kernel(wt_ref, x_ref, o_ref):
    # (2, 8) @ (8, tile_n) -> (2, tile_n), lane-dense on N.
    o_ref[...] = jnp.dot(
        wt_ref[...], x_ref[...], preferred_element_type=jnp.float32
    ).astype(o_ref.dtype)
    # TODO(synk): the remaining PyTorch ops (matmul with Tanh's nonexistent
    # .weight and the shape-mismatched bias matmuls) raise in PyTorch and are
    # intentionally not emulated.


@functools.partial(jax.jit, static_argnames=("tile_n",))
def matmul_forward(x, v, w0, w1, w2, *, tile_n=512):
    """x: (8, N) float32, matching the PyTorch input layout. Returns (N, 2)."""
    d_in, n = x.shape

    # Fold the whole weight chain once on the host (exact f32):
    #   W = v @ W0.T @ W1.T @ W2.T  -> (8, 2);  kernel uses Wt = W.T (2, 8).
    hi = jax.lax.Precision.HIGHEST
    w_fold = jnp.dot(
        jnp.dot(jnp.dot(v, w0.T, precision=hi), w1.T, precision=hi),
        w2.T,
        precision=hi,
    )                                   # (8, 2)
    wt = w_fold.T                       # (2, 8) lane-dense small block

    # Pad N to a lane-aligned tile multiple (tile must be a multiple of 128).
    tile = min(tile_n, _round_up(n, 128))
    tile = _round_up(tile, 128)
    n_pad = _round_up(n, tile)
    x_p = x if n_pad == n else jnp.pad(x, ((0, 0), (0, n_pad - n)))

    out_t = pl.pallas_call(
        _folded_matmul_kernel,
        out_shape=jax.ShapeDtypeStruct((2, n_pad), x.dtype),
        grid=(n_pad // tile,),
        in_specs=[
            pl.BlockSpec((2, d_in), lambda i: (0, 0)),       # folded weight
            pl.BlockSpec((d_in, tile), lambda i: (0, i)),    # x tile (8, tile)
        ],
        out_specs=pl.BlockSpec((2, tile), lambda i: (0, i)),  # out tile (2, tile)
        compiler_params=pltpu.CompilerParams(
            dimension_semantics=("parallel",),
        ),
    )(wt, x_p)

    # Restore the PyTorch result layout (N, 2).
    return out_t[:, :n].T


def _init_params(key):
    """Parameter shapes mirroring the module's __init__ (non-zero v for a
    meaningful correctness check)."""
    import math

    kv, k0, k1, k2 = jax.random.split(key, 4)

    def linear_weight(k, out_f, in_f):
        bound = 1.0 / math.sqrt(in_f)
        return jax.random.uniform(
            k, (out_f, in_f), jnp.float32, minval=-bound, maxval=bound
        )

    w0 = linear_weight(k0, 8, 2)   # Linear(2, 8).weight
    w1 = linear_weight(k1, 4, 8)   # Linear(8, 4).weight
    w2 = linear_weight(k2, 2, 4)   # Linear(4, 2).weight
    # nn.Parameter(torch.zeros(8, 2)) in the module; use non-zero values here
    # so the correctness check is not trivially zero.
    v = jax.random.uniform(kv, (8, 2), jnp.float32, minval=-1.0, maxval=1.0)
    return v, w0, w1, w2


if __name__ == "__main__":
    key = jax.random.PRNGKey(0)
    kx, kp = jax.random.split(key)

    N = 8                                             # seq length (small)
    x = jax.random.normal(kx, (8, N), jnp.float32)    # (D_in=8, N) as in PyTorch

    v, w0, w1, w2 = _init_params(kp)

    out = matmul_forward(x, v, w0, w1, w2)
    out = jax.block_until_ready(out)

    # Reference: the unfused chain (same well-defined prefix), exact f32.
    hi = jax.lax.Precision.HIGHEST
    ref = x.T
    for m in (v, w0.T, w1.T, w2.T):
        ref = jnp.dot(ref, m, precision=hi)

    assert out.shape == (N, 2)
    assert jnp.allclose(out, ref, atol=1e-3, rtol=1e-3), (
        f"max abs err = {jnp.max(jnp.abs(out - ref))}"
    )

    print("KERNEL_OK")
</pallas_src>

<mosaic_0001>
module attributes {stable_mosaic.version = 11 : i64} {
  func.func @_folded_matmul_kernel(%arg0: i32, %arg1: memref<2x8xf32, #tpu.memory_space<vmem>>, %arg2: memref<8x128xf32, #tpu.memory_space<vmem>>, %arg3: memref<2x128xf32, #tpu.memory_space<vmem>>) attributes {dimension_semantics = [#tpu.dimension_semantics<parallel>], iteration_bounds = array<i64: 1>, scalar_prefetch = 0 : i64, scratch_operands = 0 : i64, tpu.core_type = #tpu.core_type<tc>, window_params = [{pipeline_mode = #tpu.pipeline_mode<synchronous>, transform_indices = @transform_0, window_bounds = array<i64: 2, 8>}, {transform_indices = @transform_1, window_bounds = array<i64: 8, 128>}, {transform_indices = @transform_2, window_bounds = array<i64: 2, 128>}]} {
    %c0 = arith.constant 0 : index
    %c0_0 = arith.constant 0 : index
    %0 = vector.load %arg1[%c0, %c0_0] : memref<2x8xf32, #tpu.memory_space<vmem>>, vector<2x8xf32>
    %c0_1 = arith.constant 0 : index
    %c0_2 = arith.constant 0 : index
    %1 = vector.load %arg2[%c0_1, %c0_2] : memref<8x128xf32, #tpu.memory_space<vmem>>, vector<8x128xf32>
    %cst = arith.constant dense<0.000000e+00> : vector<2x128xf32>
    %2 = tpu.matmul %0, %1, %cst {dimension_numbers = #tpu.dot_dimension_numbers<[1], [0], [0], [1], [0, 0, 1, 1], [], []>} : vector<2x8xf32>, vector<8x128xf32>, vector<2x128xf32> -> vector<2x128xf32>
    %c0_3 = arith.constant 0 : index
    %c0_4 = arith.constant 0 : index
    %3 = vector.load %arg3[%c0_3, %c0_4] : memref<2x128xf32, #tpu.memory_space<vmem>>, vector<2x128xf32>
    tpu.vector_store %arg3[%c0_3, %c0_4], %2 {strides = array<i32>} : memref<2x128xf32, #tpu.memory_space<vmem>>, vector<2x128xf32>,
    return
  }
  func.func @transform_0(%arg0: i32) -> (i32, i32) {
    %c0_i32 = arith.constant 0 : i32
    %c0_i32_0 = arith.constant 0 : i32
    %c0_i32_1 = arith.constant 0 : i32
    return %c0_i32, %c0_i32_0 : i32, i32
  }
  func.func @transform_1(%arg0: i32) -> (i32, i32) {
    %c0_i32 = arith.constant 0 : i32
    %c0_i32_0 = arith.constant 0 : i32
    return %c0_i32, %arg0 : i32, i32
  }
  func.func @transform_2(%arg0: i32) -> (i32, i32) {
    %c0_i32 = arith.constant 0 : i32
    %c0_i32_0 = arith.constant 0 : i32
    return %c0_i32, %arg0 : i32, i32
  }
}

</mosaic_0001>

<llo_original>
// kernel: matmul_forward.1
$region0: #{matmul_forward.1}
  #allocation0 [shape = 'u32[]', space=smem, size = 0x4, offset = 0x4, fixed_abs, tag = 'smem constant byte address 0x4 - core index']
  #allocation1 [shape = 'u32[144,128]{1,0:T(1,128)}', space=vmem, size = 0x12000, scoped, tag = 'internal scratch']
  %s0 = inlined_call_operand.vmem [shape: f32[2,8], index: 0, kind: input, shape index: {}]
  %s1 = inlined_call_operand.vmem [shape: f32[8,128], index: 1, kind: input, shape index: {}]
  %s2 = inlined_call_operand.vmem [shape: f32[2,128], index: 2, kind: output, shape index: {}]
  %s3 = sld [smem:[#allocation0]]
  $region18: #{matmul_forward.1} parent=0
    _
  %s5 = ssub.s32 1, %s3
  %s6 = scalar_select 0, %s5, %s3
  // Predicated region
  $region2: #{matmul_forward.1} parent=0 // pred_check
    _
  $region3: #{matmul_forward.1} parent=0 // pred_check_branch
    %8 = sbr.rel (0) target = $region5
  $region4: #{matmul_forward.1} parent=0 // pred_region
    _
  $region5: #{matmul_forward.1} parent=0 // pred_fallthru
    _
  // Predicated region
  $region6: #{matmul_forward.1} parent=0 // pred_check
    _
  $region7: #{matmul_forward.1} parent=0 // pred_check_branch
    %10 = sbr.rel (0) target = $region9
  $region8: #{matmul_forward.1} parent=0 // pred_region
    _
  $region9: #{matmul_forward.1} parent=0 // pred_fallthru
    _
  %v11 = vld [vmem:[%s0] sm:$0x3]
  %v12 = vld [vmem:[%s1] sm:$0xff]
  %vm13 = vcmask 64512
  %v15 = vsel %vm13, %v11, 0
  %17 = vmatprep.subr.mxu0 0.0
  %18 = vmatpush1.msra.mxu0 %v12
  %19 = vmatprep.subr.mxu0 0.0
  %20 = vmatpush1.msra.mxu0 0.0
  %21 = vmatprep.subr.mxu0 0.0
  %22 = vmatpush1.msra.mxu0 0.0
  %23 = vmatprep.subr.mxu0 0.0
  %24 = vmatpush1.msra.mxu0 0.0
  %25 = vmatprep.subr.mxu0 0.0
  %26 = vmatpush1.msra.mxu0 0.0
  %27 = vmatprep.subr.mxu0 0.0
  %28 = vmatpush1.msra.mxu0 0.0
  %29 = vmatprep.subr.mxu0 0.0
  %30 = vmatpush1.msra.mxu0 0.0
  %31 = vmatprep.subr.mxu0 0.0
  %32 = vmatpush1.msra.mxu0 0.0
  %33 = vmatprep.subr.mxu0 0.0
  %34 = vmatpush1.msra.mxu0 0.0
  %35 = vmatprep.subr.mxu0 0.0
  %36 = vmatpush1.msra.mxu0 0.0
  %37 = vmatprep.subr.mxu0 0.0
  %38 = vmatpush1.msra.mxu0 0.0
  %39 = vmatprep.subr.mxu0 0.0
  %40 = vmatpush1.msra.mxu0 0.0
  %41 = vmatprep.subr.mxu0 0.0
  %42 = vmatpush1.msra.mxu0 0.0
  %43 = vmatprep.subr.mxu0 0.0
  %44 = vmatpush1.msra.mxu0 0.0
  %45 = vmatprep.subr.mxu0 0.0
  %46 = vmatpush1.msra.mxu0 0.0
  %47 = vmatprep.subr.mxu0 0.0
  %48 = vmatpush1.msra.mxu0 0.0
  %49 = vmatprep.subr.mxu0 0.0
  %50 = vmatpush1.msra.mxu0 0.0
  %51 = vmatprep.subr.mxu0 0.0
  %52 = vmatpush1.msra.mxu0 0.0
  %53 = vmatprep.subr.mxu0 0.0
  %54 = vmatpush1.msra.mxu0 0.0
  %55 = vmatprep.subr.mxu0 0.0
  %56 = vmatpush1.msra.mxu0 0.0
  %57 = vmatprep.subr.mxu0 0.0
  %58 = vmatpush1.msra.mxu0 0.0
  %59 = vmatprep.subr.mxu0 0.0
  %60 = vmatpush1.msra.mxu0 0.0
  %61 = vmatprep.subr.mxu0 0.0
  %62 = vmatpush1.msra.mxu0 0.0
  %63 = vmatprep.subr.mxu0 0.0
  %64 = vmatpush1.msra.mxu0 0.0
  %65 = vmatprep.subr.mxu0 0.0
  %66 = vmatpush1.msra.mxu0 0.0
  %67 = vmatprep.subr.mxu0 0.0
  %68 = vmatpush1.msra.mxu0 0.0
  %69 = vmatprep.subr.mxu0 0.0
  %70 = vmatpush1.msra.mxu0 0.0
  %71 = vmatprep.subr.mxu0 0.0
  %72 = vmatpush1.msra.mxu0 0.0
  %73 = vmatprep.subr.mxu0 0.0
  %74 = vmatpush1.msra.mxu0 0.0
  %75 = vmatprep.subr.mxu0 0.0
  %76 = vmatpush1.msra.mxu0 0.0
  %77 = vmatprep.subr.mxu0 0.0
  %78 = vmatpush1.msra.mxu0 0.0
  %79 = vmatprep.subr.mxu0 0.0
  %80 = vmatpush1.msra.mxu0 0.0
  %81 = vmatprep.mubr.f32.mxu0 0.0
  %82 = vmatmul.mubr.f32.gmra.mrb[0].mxu0 %v15
  %v83 = vpop.f32.mrb[0].mxu0
  %v84 = vadd.f32 0.0, %v83
  %v85 = vpop.f32.mrb[0].mxu0
  %86 = vdwg.mxu0
  %87 = vst [vmem:[%s2] sm:$0x3] %v84
  // Predicated region
  $region10: #{matmul_forward.1} parent=0 // pred_check
    _
  $region11: #{matmul_forward.1} parent=0 // pred_check_branch
    %89 = sbr.rel (0) target = $region13
  $region12: #{matmul_forward.1} parent=0 // pred_region
    _
  $region13: #{matmul_forward.1} parent=0 // pred_fallthru
    _
  // Predicated region
  $region14: #{matmul_forward.1} parent=0 // pred_check
    _
  $region15: #{matmul_forward.1} parent=0 // pred_check_branch
    %91 = sbr.rel (0) target = $region17
  $region16: #{matmul_forward.1} parent=0 // pred_region
    _
  $region17: #{matmul_forward.1} parent=0 // pred_fallthru
    _

</llo_original>
